<compile_context>
chip_gen: v7x
topology: tpu7x:2x2x1
jax: 0.10.0
libtpu: 0.0.40
codegen_flags: <defaults>
</compile_context>

<pallas_src>
import functools

import jax
import jax.numpy as jnp
from jax import lax
from jax.experimental import pallas as pl
from jax.experimental.pallas import tpu as pltpu


def _round_up(x, m):
    return (x + m - 1) // m * m


def _cdiv(a, b):
    return (a + b - 1) // b


def _sublane(dtype):
    # second-to-last-dim alignment for a vreg tile of this dtype
    itemsize = jnp.dtype(dtype).itemsize
    return {4: 8, 2: 16, 1: 32}.get(itemsize, 8)


def _pad2(arr, rows, cols):
    pr, pc = rows - arr.shape[0], cols - arr.shape[1]
    if pr or pc:
        arr = jnp.pad(arr, ((0, pr), (0, pc)))
    return arr


def _linear_lora_kernel(x_ref, w_ref, b_ref, xa_ref, bl_ref, o_ref, acc_ref,
                        *, alpha):
    # x_ref:  (tm, tk)    input tile
    # w_ref:  (tn, tk)    weight tile in native (out, in) layout
    # b_ref:  (1, tn)     bias tile
    # xa_ref: (tm, rank)  precomputed x @ A tile (constant across j, k)
    # bl_ref: (rank, tn)  LoRA B tile
    # o_ref:  (tm, tn)    output tile
    # acc_ref:(tm, tn)    f32 accumulator scratch
    k = pl.program_id(2)

    @pl.when(k == 0)
    def _init():
        acc_ref[...] = jnp.zeros_like(acc_ref)

    # Base path: x (tm,tk) contracted with W (tn,tk) along their last dims
    # (NT matmul) -> (tm, tn); f32 accumulation, native-dtype MXU inputs.
    acc_ref[...] += lax.dot_general(
        x_ref[...], w_ref[...],
        dimension_numbers=(((1,), (1,)), ((), ())),
        preferred_element_type=jnp.float32,
    )

    @pl.when(k == pl.num_programs(2) - 1)
    def _finalize():
        lora = jnp.dot(xa_ref[...], bl_ref[...],
                       preferred_element_type=jnp.float32)
        out = acc_ref[...] + b_ref[...].astype(jnp.float32) + alpha * lora
        o_ref[...] = out.astype(o_ref.dtype)


def linear_with_lora(x, w, b, lora_a, lora_b, alpha, *,
                     tm=512, tn=512, tk=1024):
    """x: (..., in_features) -> (..., out_features).

    w: (out, in) PyTorch nn.Linear weight, b: (out,),
    lora_a: (in, rank), lora_b: (rank, out), alpha: python float.

    Tile hints tm/tn/tk are upper bounds; they are rounded to hardware
    alignment and clamped to the (padded) problem size.  Defaults target all
    of v5e/v6e/v7x; for bf16 weights tn=1024 is a good choice on v6e/v7x.
    """
    out_features, in_features = w.shape
    rank = lora_a.shape[1]
    lead_shape = x.shape[:-1]

    x2 = x.reshape(-1, in_features)
    M = x2.shape[0]
    dtype = x.dtype
    sub = _sublane(dtype)

    # ---- tile selection (lane/MXU aligned; padding waste bounded) ----------
    # N: always a multiple of 128 lanes (avoid masked partial stores).
    np_min = _round_up(out_features, 128)
    tn = min(_round_up(tn, 128), np_min)
    Np = _round_up(out_features, tn)

    # K: pick the number of splits first, then a 128-aligned tile, so awkward
    # in_features don't get padded up to a full fixed tk.
    kp_min = _round_up(in_features, 128)
    tk_cap = min(_round_up(tk, 128), kp_min)
    k_splits = _cdiv(in_features, tk_cap)
    tk = _round_up(_cdiv(in_features, k_splits), 128)
    Kp = _round_up(in_features, tk)

    # M: sublane-aligned, clamped to the problem size.
    tm = min(_round_up(tm, sub), _round_up(M, sub))
    Mp = _round_up(M, tm)

    # ---- wrapper-side prep --------------------------------------------------
    # LoRA first stage hoisted out of the kernel's (j, k) loop (rank is tiny).
    xa = jnp.dot(x2, lora_a)                       # (M, rank), x.dtype

    # NOTE: for a fixed layer, the padded weight-side tensors below are
    # shape-static and should be computed once at init and cached; no
    # transpose of W is ever materialized (NT contraction in the kernel).
    x_p = _pad2(x2, Mp, Kp)
    w_p = _pad2(w, Np, Kp)                         # native (out, in) layout
    b_p = _pad2(b.reshape(1, out_features), 1, Np)
    xa_p = _pad2(xa, Mp, rank)
    bl_p = _pad2(lora_b, rank, Np)

    grid = (Mp // tm, Np // tn, Kp // tk)

    # Scoped-VMEM budget: double-buffered tiles + f32 accumulator, capped so
    # the same config is safe on v7x's 64 MiB / TC.
    itemsize = jnp.dtype(dtype).itemsize
    est = (2 * (tm * tk + tn * tk + tm * tn) * itemsize
           + 2 * (tm * rank + rank * tn + tn) * 4
           + tm * tn * 4)
    vmem_limit = int(min(48 * 2**20, max(32 * 2**20, int(est * 1.5))))

    kernel = functools.partial(_linear_lora_kernel, alpha=float(alpha))

    out = pl.pallas_call(
        kernel,
        out_shape=jax.ShapeDtypeStruct((Mp, Np), dtype),
        grid_spec=pltpu.PrefetchScalarGridSpec(
            num_scalar_prefetch=0,
            grid=grid,
            in_specs=[
                pl.BlockSpec((tm, tk), lambda i, j, k: (i, k)),     # x tile
                pl.BlockSpec((tn, tk), lambda i, j, k: (j, k)),     # W tile (out,in)
                pl.BlockSpec((1, tn), lambda i, j, k: (0, j)),      # bias tile
                pl.BlockSpec((tm, rank), lambda i, j, k: (i, 0)),   # x@A tile
                pl.BlockSpec((rank, tn), lambda i, j, k: (0, j)),   # LoRA B tile
            ],
            out_specs=pl.BlockSpec((tm, tn), lambda i, j, k: (i, j)),
            scratch_shapes=[
                pltpu.VMEM((tm, tn), jnp.float32),                  # f32 accumulator
            ],
        ),
        compiler_params=pltpu.CompilerParams(
            dimension_semantics=("parallel", "parallel", "arbitrary"),
            vmem_limit_bytes=vmem_limit,
        ),
    )(x_p, w_p, b_p, xa_p, bl_p)

    out = out[:M, :out_features]
    return out.reshape(*lead_shape, out_features)


if __name__ == "__main__":
    key = jax.random.PRNGKey(0)
    keys = jax.random.split(key, 10)
    (k_x, k_w, k_b, k_a, k_bl, k_x2, k_w2, k_b2, k_a2, k_bl2) = keys

    # --- Check 1: small shapes (single tile per axis, N/K padded to 128) ----
    batch, seq, in_f, out_f, rank, alpha = 2, 8, 32, 32, 4, 4.0
    x = jax.random.normal(k_x, (batch, seq, in_f), dtype=jnp.float32)
    w = jax.random.normal(k_w, (out_f, in_f), dtype=jnp.float32) * 0.1
    b = jax.random.normal(k_b, (out_f,), dtype=jnp.float32) * 0.1
    lora_a = jax.random.normal(k_a, (in_f, rank), dtype=jnp.float32)
    lora_b = jax.random.normal(k_bl, (rank, out_f), dtype=jnp.float32) * 0.1

    out = jax.block_until_ready(linear_with_lora(x, w, b, lora_a, lora_b, alpha))
    ref = x @ w.T + b + alpha * ((x @ lora_a) @ lora_b)
    assert out.shape == (batch, seq, out_f)
    assert jnp.allclose(out, ref, atol=5e-2, rtol=5e-2)

    # --- Check 2: ragged M, multi-tile N and K (accumulation + padding) -----
    batch2, seq2, in_f2, out_f2, rank2, alpha2 = 3, 7, 512, 384, 8, 2.0
    x2 = jax.random.normal(k_x2, (batch2, seq2, in_f2), dtype=jnp.float32)
    w2 = jax.random.normal(k_w2, (out_f2, in_f2), dtype=jnp.float32) * 0.05
    b2_ = jax.random.normal(k_b2, (out_f2,), dtype=jnp.float32) * 0.1
    a2 = jax.random.normal(k_a2, (in_f2, rank2), dtype=jnp.float32) * 0.1
    bl2 = jax.random.normal(k_bl2, (rank2, out_f2), dtype=jnp.float32) * 0.1

    out2 = jax.block_until_ready(
        linear_with_lora(x2, w2, b2_, a2, bl2, alpha2, tm=512, tn=256, tk=256))
    ref2 = x2 @ w2.T + b2_ + alpha2 * ((x2 @ a2) @ bl2)
    assert out2.shape == (batch2, seq2, out_f2)
    assert jnp.allclose(out2, ref2, atol=5e-2, rtol=5e-2)

    print("KERNEL_OK")
</pallas_src>

<mosaic_0001>
module attributes {stable_mosaic.version = 11 : i64} {
  func.func @_linear_lora_kernel(%arg0: i32, %arg1: i32, %arg2: i32, %arg3: memref<16x128xf32, #tpu.memory_space<vmem>>, %arg4: memref<128x128xf32, #tpu.memory_space<vmem>>, %arg5: memref<1x128xf32, #tpu.memory_space<vmem>>, %arg6: memref<16x4xf32, #tpu.memory_space<vmem>>, %arg7: memref<4x128xf32, #tpu.memory_space<vmem>>, %arg8: memref<16x128xf32, #tpu.memory_space<vmem>>, %arg9: memref<16x128xf32, #tpu.memory_space<vmem>>) attributes {dimension_semantics = [#tpu.dimension_semantics<parallel>, #tpu.dimension_semantics<parallel>, #tpu.dimension_semantics<arbitrary>], iteration_bounds = array<i64: 1, 1, 1>, scalar_prefetch = 0 : i64, scratch_operands = 1 : i64, tpu.core_type = #tpu.core_type<tc>, window_params = [{transform_indices = @transform_0, window_bounds = array<i64: 16, 128>}, {transform_indices = @transform_1, window_bounds = array<i64: 128, 128>}, {transform_indices = @transform_2, window_bounds = array<i64: 1, 128>}, {transform_indices = @transform_3, window_bounds = array<i64: 16, 4>}, {transform_indices = @transform_4, window_bounds = array<i64: 4, 128>}, {transform_indices = @transform_5, window_bounds = array<i64: 16, 128>}]} {
    %c0_i32 = arith.constant 0 : i32
    %0 = arith.cmpi eq, %arg2, %c0_i32 : i32
    %1 = arith.extui %0 : i1 to i32
    %c0_i32_0 = arith.constant 0 : i32
    %2 = arith.cmpi ne, %1, %c0_i32_0 : i32
    scf.if %2 {
      %cst_10 = arith.constant 0.000000e+00 : f32
      %12 = vector.broadcast %cst_10 : f32 to vector<16x128xf32>
      %c0_11 = arith.constant 0 : index
      %c0_12 = arith.constant 0 : index
      %13 = vector.load %arg9[%c0_11, %c0_12] : memref<16x128xf32, #tpu.memory_space<vmem>>, vector<16x128xf32>
      tpu.vector_store %arg9[%c0_11, %c0_12], %12 {strides = array<i32>} : memref<16x128xf32, #tpu.memory_space<vmem>>, vector<16x128xf32>,
    } else {
    }
    %c0 = arith.constant 0 : index
    %c0_1 = arith.constant 0 : index
    %3 = vector.load %arg9[%c0, %c0_1] : memref<16x128xf32, #tpu.memory_space<vmem>>, vector<16x128xf32>
    %c0_2 = arith.constant 0 : index
    %c0_3 = arith.constant 0 : index
    %4 = vector.load %arg3[%c0_2, %c0_3] : memref<16x128xf32, #tpu.memory_space<vmem>>, vector<16x128xf32>
    %c0_4 = arith.constant 0 : index
    %c0_5 = arith.constant 0 : index
    %5 = vector.load %arg4[%c0_4, %c0_5] : memref<128x128xf32, #tpu.memory_space<vmem>>, vector<128x128xf32>
    %cst = arith.constant dense<0.000000e+00> : vector<16x128xf32>
    %6 = tpu.matmul %4, %5, %cst {dimension_numbers = #tpu.dot_dimension_numbers<[1], [1], [0], [0], [0, 0, 1, 0], [], []>} : vector<16x128xf32>, vector<128x128xf32>, vector<16x128xf32> -> vector<16x128xf32>
    %7 = arith.addf %3, %6 : vector<16x128xf32>
    %c0_6 = arith.constant 0 : index
    %c0_7 = arith.constant 0 : index
    %8 = vector.load %arg9[%c0_6, %c0_7] : memref<16x128xf32, #tpu.memory_space<vmem>>, vector<16x128xf32>
    tpu.vector_store %arg9[%c0_6, %c0_7], %7 {strides = array<i32>} : memref<16x128xf32, #tpu.memory_space<vmem>>, vector<16x128xf32>,
    %c0_i32_8 = arith.constant 0 : i32
    %9 = arith.cmpi eq, %arg2, %c0_i32_8 : i32
    %10 = arith.extui %9 : i1 to i32
    %c0_i32_9 = arith.constant 0 : i32
    %11 = arith.cmpi ne, %10, %c0_i32_9 : i32
    scf.if %11 {
      %c0_10 = arith.constant 0 : index
      %c0_11 = arith.constant 0 : index
      %12 = vector.load %arg6[%c0_10, %c0_11] : memref<16x4xf32, #tpu.memory_space<vmem>>, vector<16x4xf32>
      %c0_12 = arith.constant 0 : index
      %c0_13 = arith.constant 0 : index
      %13 = vector.load %arg7[%c0_12, %c0_13] : memref<4x128xf32, #tpu.memory_space<vmem>>, vector<4x128xf32>
      %cst_14 = arith.constant dense<0.000000e+00> : vector<16x128xf32>
      %14 = tpu.matmul %12, %13, %cst_14 {dimension_numbers = #tpu.dot_dimension_numbers<[1], [0], [0], [1], [0, 0, 1, 1], [], []>} : vector<16x4xf32>, vector<4x128xf32>, vector<16x128xf32> -> vector<16x128xf32>
      %c0_15 = arith.constant 0 : index
      %c0_16 = arith.constant 0 : index
      %15 = vector.load %arg9[%c0_15, %c0_16] : memref<16x128xf32, #tpu.memory_space<vmem>>, vector<16x128xf32>
      %c0_17 = arith.constant 0 : index
      %c0_18 = arith.constant 0 : index
      %16 = vector.load %arg5[%c0_17, %c0_18] : memref<1x128xf32, #tpu.memory_space<vmem>>, vector<1x128xf32>
      %17 = vector.broadcast %16 : vector<1x128xf32> to vector<16x128xf32>
      %18 = arith.addf %15, %17 : vector<16x128xf32>
      %cst_19 = arith.constant 4.000000e+00 : f32
      %19 = vector.broadcast %cst_19 : f32 to vector<16x128xf32>
      %20 = arith.mulf %19, %14 : vector<16x128xf32>
      %21 = arith.addf %18, %20 : vector<16x128xf32>
      %c0_20 = arith.constant 0 : index
      %c0_21 = arith.constant 0 : index
      %22 = vector.load %arg8[%c0_20, %c0_21] : memref<16x128xf32, #tpu.memory_space<vmem>>, vector<16x128xf32>
      tpu.vector_store %arg8[%c0_20, %c0_21], %21 {strides = array<i32>} : memref<16x128xf32, #tpu.memory_space<vmem>>, vector<16x128xf32>,
    } else {
    }
    return
  }
  func.func @transform_0(%arg0: i32, %arg1: i32, %arg2: i32) -> (i32, i32) {
    %c0_i32 = arith.constant 0 : i32
    return %arg0, %arg2 : i32, i32
  }
  func.func @transform_1(%arg0: i32, %arg1: i32, %arg2: i32) -> (i32, i32) {
    %c0_i32 = arith.constant 0 : i32
    return %arg1, %arg2 : i32, i32
  }
  func.func @transform_2(%arg0: i32, %arg1: i32, %arg2: i32) -> (i32, i32) {
    %c0_i32 = arith.constant 0 : i32
    %c0_i32_0 = arith.constant 0 : i32
    return %c0_i32, %arg1 : i32, i32
  }
  func.func @transform_3(%arg0: i32, %arg1: i32, %arg2: i32) -> (i32, i32) {
    %c0_i32 = arith.constant 0 : i32
    %c0_i32_0 = arith.constant 0 : i32
    return %arg0, %c0_i32 : i32, i32
  }
  func.func @transform_4(%arg0: i32, %arg1: i32, %arg2: i32) -> (i32, i32) {
    %c0_i32 = arith.constant 0 : i32
    %c0_i32_0 = arith.constant 0 : i32
    return %c0_i32, %arg1 : i32, i32
  }
  func.func @transform_5(%arg0: i32, %arg1: i32, %arg2: i32) -> (i32, i32) {
    %c0_i32 = arith.constant 0 : i32
    return %arg0, %arg1 : i32, i32
  }
}

</mosaic_0001>

<llo_original>
// kernel: tpu_custom_call.1
$region0: #{tpu_custom_call.1}
  #allocation0 [shape = 'u32[]', space=smem, size = 0x4, offset = 0x4, fixed_abs, tag = 'smem constant byte address 0x4 - core index']
  #allocation1 [shape = 'u32[144,128]{1,0:T(1,128)}', space=vmem, size = 0x12000, scoped, tag = 'internal scratch']
  #allocation2 [shape = 'f32[16,128]{1,0:T(8,128)}', space=vmem, size = 0x2000, scoped, tag = 'scratch operand']
  %s0 = inlined_call_operand.vmem [shape: f32[16,128], index: 0, kind: input, shape index: {}]
  %s1 = inlined_call_operand.hbm [shape: f32[128,128], index: 1, kind: input, shape index: {}]
  %s2 = inlined_call_operand.vmem [shape: f32[1,128], index: 2, kind: input, shape index: {}]
  %s3 = inlined_call_operand.vmem [shape: f32[16,4], index: 3, kind: input, shape index: {}]
  %s4 = inlined_call_operand.vmem [shape: f32[4,128], index: 4, kind: input, shape index: {}]
  %s5 = inlined_call_operand.hbm [shape: f32[16,128], index: 5, kind: output, shape index: {}]
  %s6 = sld [smem:[#allocation0]]
  $region42: #{tpu_custom_call.1} parent=0
    _
  %s8 = ssub.s32 1, %s6
  %s9 = scalar_select 0, %s8, %s6
  $region1: #{tpu_custom_call.1} parent=0
    #allocation3 [shape = 'u8[65536]{0}', space=vmem, size = 0x10000, scoped, tag = 'input window, operand 1, single buffered']
    #allocation4 [shape = 's32[1]{0}', space=sflag, size = 0x4, scoped, tag = 'scoped memory for tpu_custom_call.1']
    #allocation5 [shape = 's32[1]{0}', space=sflag, size = 0x4, scoped, tag = 'scoped memory for tpu_custom_call.1']
    #allocation6 [shape = 'u8[8192]{0}', space=vmem, size = 0x2000, scoped, tag = 'output window, operand 0, single buffered']
    %10 = vsyncpa [#allocation4], 0
    %11 = vsyncpa [#allocation5], 0
    // Predicated region
    $region2: #{tpu_custom_call.1} parent=1 // pred_check
      _
    $region3: #{tpu_custom_call.1} parent=1 // pred_check_branch
      %13 = sbr.rel (0) target = $region5
    $region4: #{tpu_custom_call.1} parent=1 // pred_region
      _
    $region5: #{tpu_custom_call.1} parent=1 // pred_fallthru
      _
    // Predicated region
    $region6: #{tpu_custom_call.1} parent=1 // pred_check
      _
    $region7: #{tpu_custom_call.1} parent=1 // pred_check_branch
      %15 = sbr.rel (0) target = $region9
    $region8: #{tpu_custom_call.1} parent=1 // pred_region
      %s17 = ssub.s32 2048, 2048
      %18 = vsyncadd [#allocation4], %s17
      %s19 = sshll.u32 [#allocation3], 4
      %s20 = int_to_ptr.vmem [resolvable:$true] %s19
      %25 = dma.hbm_to_vmem [thread:$0]  %s1, 2048, %s20, [#allocation4], 128, 128, 8
    $region9: #{tpu_custom_call.1} parent=1 // pred_fallthru
      _
    // Predicated region
    $region10: #{tpu_custom_call.1} parent=1 // pred_check
      _
    $region11: #{tpu_custom_call.1} parent=1 // pred_check_branch
      %27 = sbr.rel (0) target = $region13
    $region12: #{tpu_custom_call.1} parent=1 // pred_region
      _
    $region13: #{tpu_custom_call.1} parent=1 // pred_fallthru
      _
    // Predicated region
    $region14: #{tpu_custom_call.1} parent=1 // pred_check
      _
    $region15: #{tpu_custom_call.1} parent=1 // pred_check_branch
      %29 = sbr.rel (0) target = $region17
    $region16: #{tpu_custom_call.1} parent=1 // pred_region
      _
    $region17: #{tpu_custom_call.1} parent=1 // pred_fallthru
      _
    // Predicated region
    $region18: #{tpu_custom_call.1} parent=1 // pred_check
      _
    $region19: #{tpu_custom_call.1} parent=1 // pred_check_branch
      %31 = sbr.rel (0) target = $region21
    $region20: #{tpu_custom_call.1} parent=1 // pred_region
      _
    $region21: #{tpu_custom_call.1} parent=1 // pred_fallthru
      _
    // Predicated region
    $region22: #{tpu_custom_call.1} parent=1 // pred_check
      _
    $region23: #{tpu_custom_call.1} parent=1 // pred_check_branch
      %33 = sbr.rel (0) target = $region25
    $region24: #{tpu_custom_call.1} parent=1 // pred_region
      %34 = dma.done [#allocation4], 2048
    $region25: #{tpu_custom_call.1} parent=1 // pred_fallthru
      _
    %p35 = scmp.eq.s32.totalorder 0, 0
    // Predicated region
    $region26: #{tpu_custom_call.1} parent=1 // pred_check
      %p36 = pneg %p35
    $region27: #{tpu_custom_call.1} parent=1 // pred_check_branch
      %38 = sbr.rel (%p36) target = $region29
    $region28: #{tpu_custom_call.1} parent=1 // pred_region
      %39 = vst [vmem:[#allocation2] sm:$0xff] 0.0
      %40 = vst [vmem:[#allocation2 + $0x8] sm:$0xff] 0.0
    $region29: #{tpu_custom_call.1} parent=1 // pred_fallthru
      _
    %v41 = vld [vmem:[#allocation2] sm:$0xff]
    %v42 = vld [vmem:[#allocation2 + $0x8] sm:$0xff]
    %v43 = vld [vmem:[%s0] sm:$0xff]
    %v44 = vld [vmem:[%s0 + $0x8] sm:$0xff]
    %v45 = vld [vmem:[#allocation3] sm:$0xff]
    %v46 = vld [vmem:[#allocation3 + $0x8] sm:$0xff]
    %v47 = vld [vmem:[#allocation3 + $0x10] sm:$0xff]
    %v48 = vld [vmem:[#allocation3 + $0x18] sm:$0xff]
    %v49 = vld [vmem:[#allocation3 + $0x20] sm:$0xff]
    %v50 = vld [vmem:[#allocation3 + $0x28] sm:$0xff]
    %v51 = vld [vmem:[#allocation3 + $0x30] sm:$0xff]
    %v52 = vld [vmem:[#allocation3 + $0x38] sm:$0xff]
    %v53 = vld [vmem:[#allocation3 + $0x40] sm:$0xff]
    %v54 = vld [vmem:[#allocation3 + $0x48] sm:$0xff]
    %v55 = vld [vmem:[#allocation3 + $0x50] sm:$0xff]
    %v56 = vld [vmem:[#allocation3 + $0x58] sm:$0xff]
    %v57 = vld [vmem:[#allocation3 + $0x60] sm:$0xff]
    %v58 = vld [vmem:[#allocation3 + $0x68] sm:$0xff]
    %v59 = vld [vmem:[#allocation3 + $0x70] sm:$0xff]
    %v60 = vld [vmem:[#allocation3 + $0x78] sm:$0xff]
    %61 = vmatprep.subr.mxu0 0.0
    %62 = vmatpush1.xpose.msra.mxu0 %v45
    %63 = vmatprep.subr.mxu0 0.0
    %64 = vmatpush1.xpose.msra.mxu0 %v46
    %65 = vmatprep.subr.mxu0 0.0
    %66 = vmatpush1.xpose.msra.mxu0 %v47
    %67 = vmatprep.subr.mxu0 0.0
    %68 = vmatpush1.xpose.msra.mxu0 %v48
    %69 = vmatprep.subr.mxu0 0.0
    %70 = vmatpush1.xpose.msra.mxu0 %v49
    %71 = vmatprep.subr.mxu0 0.0
    %72 = vmatpush1.xpose.msra.mxu0 %v50
    %73 = vmatprep.subr.mxu0 0.0
    %74 = vmatpush1.xpose.msra.mxu0 %v51
    %75 = vmatprep.subr.mxu0 0.0
    %76 = vmatpush1.xpose.msra.mxu0 %v52
    %77 = vmatprep.subr.mxu0 0.0
    %78 = vmatpush1.xpose.msra.mxu0 %v53
    %79 = vmatprep.subr.mxu0 0.0
    %80 = vmatpush1.xpose.msra.mxu0 %v54
    %81 = vmatprep.subr.mxu0 0.0
    %82 = vmatpush1.xpose.msra.mxu0 %v55
    %83 = vmatprep.subr.mxu0 0.0
    %84 = vmatpush1.xpose.msra.mxu0 %v56
    %85 = vmatprep.subr.mxu0 0.0
    %86 = vmatpush1.xpose.msra.mxu0 %v57
    %87 = vmatprep.subr.mxu0 0.0
    %88 = vmatpush1.xpose.msra.mxu0 %v58
    %89 = vmatprep.subr.mxu0 0.0
    %90 = vmatpush1.xpose.msra.mxu0 %v59
    %91 = vmatprep.subr.mxu0 0.0
    %92 = vmatpush1.xpose.msra.mxu0 %v60
    %93 = vmatprep.subr.mxu0 0.0
    %94 = vmatpush1.xpose.msra.mxu0 0.0
    %95 = vmatprep.subr.mxu0 0.0
    %96 = vmatpush1.xpose.msra.mxu0 0.0
    %97 = vmatprep.subr.mxu0 0.0
    %98 = vmatpush1.xpose.msra.mxu0 0.0
    %99 = vmatprep.subr.mxu0 0.0
    %100 = vmatpush1.xpose.msra.mxu0 0.0
    %101 = vmatprep.subr.mxu0 0.0
    %102 = vmatpush1.xpose.msra.mxu0 0.0
    %103 = vmatprep.subr.mxu0 0.0
    %104 = vmatpush1.xpose.msra.mxu0 0.0
    %105 = vmatprep.subr.mxu0 0.0
    %106 = vmatpush1.xpose.msra.mxu0 0.0
    %107 = vmatprep.subr.mxu0 0.0
    %108 = vmatpush1.xpose.msra.mxu0 0.0
    %109 = vmatprep.subr.mxu0 0.0
    %110 = vmatpush1.xpose.msra.mxu0 0.0
    %111 = vmatprep.subr.mxu0 0.0
    %112 = vmatpush1.xpose.msra.mxu0 0.0
    %113 = vmatprep.subr.mxu0 0.0
    %114 = vmatpush1.xpose.msra.mxu0 0.0
    %115 = vmatprep.subr.mxu0 0.0
    %116 = vmatpush1.xpose.msra.mxu0 0.0
    %117 = vmatprep.subr.mxu0 0.0
    %118 = vmatpush1.xpose.msra.mxu0 0.0
    %119 = vmatprep.subr.mxu0 0.0
    %120 = vmatpush1.xpose.msra.mxu0 0.0
    %121 = vmatprep.subr.mxu0 0.0
    %122 = vmatpush1.xpose.msra.mxu0 0.0
    %123 = vmatprep.subr.mxu0 0.0
    %124 = vmatpush1.xpose.msra.mxu0 0.0
    %125 = vmatprep.mubr.f32.mxu0 0.0
    %126 = vmatmul.mubr.f32.gmra.mrb[0].mxu0 %v43
    %v127 = vpop.f32.mrb[0].mxu0
    %v128 = vadd.f32 0.0, %v127
    %v129 = vpop.f32.mrb[0].mxu0
    %130 = vmatprep.mubr.f32.mxu0 0.0
    %131 = vmatmul.mubr.f32.gmra.mrb[0].mxu0 %v44
    %v132 = vpop.f32.mrb[0].mxu0
    %v133 = vadd.f32 0.0, %v132
    %v134 = vpop.f32.mrb[0].mxu0
    %135 = vdwg.mxu0
    %v136 = vadd.f32 %v41, %v128
    %v137 = vadd.f32 %v42, %v133
    %138 = vst [vmem:[#allocation2] sm:$0xff] %v136
    %139 = vst [vmem:[#allocation2 + $0x8] sm:$0xff] %v137
    // Predicated region
    $region30: #{tpu_custom_call.1} parent=1 // pred_check
      %p140 = pneg %p35
    $region31: #{tpu_custom_call.1} parent=1 // pred_check_branch
      %142 = sbr.rel (%p140) target = $region33
    $region32: #{tpu_custom_call.1} parent=1 // pred_region
      %v143 = vld [vmem:[%s3] sm:$0xff]
      %v144 = vld [vmem:[%s3 + $0x8] sm:$0xff]
      %v145 = vld [vmem:[%s4] sm:$0xf]
      %vm146 = vcmask 31744
      %v148 = vsel %vm146, %v143, 0
      %v151 = vsel %vm146, %v144, 0
      %vm153 = vcmask 1043456
      %v155 = vsel %vm153, %v145, 0
      %157 = vmatprep.subr.mxu0 0.0
      %158 = vmatpush1.msra.mxu0 %v155
      %159 = vmatprep.subr.mxu0 0.0
      %160 = vmatpush1.msra.mxu0 0.0
      %161 = vmatprep.subr.mxu0 0.0
      %162 = vmatpush1.msra.mxu0 0.0
      %163 = vmatprep.subr.mxu0 0.0
      %164 = vmatpush1.msra.mxu0 0.0
      %165 = vmatprep.subr.mxu0 0.0
      %166 = vmatpush1.msra.mxu0 0.0
      %167 = vmatprep.subr.mxu0 0.0
      %168 = vmatpush1.msra.mxu0 0.0
      %169 = vmatprep.subr.mxu0 0.0
      %170 = vmatpush1.msra.mxu0 0.0
      %171 = vmatprep.subr.mxu0 0.0
      %172 = vmatpush1.msra.mxu0 0.0
      %173 = vmatprep.subr.mxu0 0.0
      %174 = vmatpush1.msra.mxu0 0.0
      %175 = vmatprep.subr.mxu0 0.0
      %176 = vmatpush1.msra.mxu0 0.0
      %177 = vmatprep.subr.mxu0 0.0
      %178 = vmatpush1.msra.mxu0 0.0
      %179 = vmatprep.subr.mxu0 0.0
      %180 = vmatpush1.msra.mxu0 0.0
      %181 = vmatprep.subr.mxu0 0.0
      %182 = vmatpush1.msra.mxu0 0.0
      %183 = vmatprep.subr.mxu0 0.0
      %184 = vmatpush1.msra.mxu0 0.0
      %185 = vmatprep.subr.mxu0 0.0
      %186 = vmatpush1.msra.mxu0 0.0
      %187 = vmatprep.subr.mxu0 0.0
      %188 = vmatpush1.msra.mxu0 0.0
      %189 = vmatprep.subr.mxu0 0.0
      %190 = vmatpush1.msra.mxu0 0.0
      %191 = vmatprep.subr.mxu0 0.0
      %192 = vmatpush1.msra.mxu0 0.0
      %193 = vmatprep.subr.mxu0 0.0
      %194 = vmatpush1.msra.mxu0 0.0
      %195 = vmatprep.subr.mxu0 0.0
      %196 = vmatpush1.msra.mxu0 0.0
      %197 = vmatprep.subr.mxu0 0.0
      %198 = vmatpush1.msra.mxu0 0.0
      %199 = vmatprep.subr.mxu0 0.0
      %200 = vmatpush1.msra.mxu0 0.0
      %201 = vmatprep.subr.mxu0 0.0
      %202 = vmatpush1.msra.mxu0 0.0
      %203 = vmatprep.subr.mxu0 0.0
      %204 = vmatpush1.msra.mxu0 0.0
      %205 = vmatprep.subr.mxu0 0.0
      %206 = vmatpush1.msra.mxu0 0.0
      %207 = vmatprep.subr.mxu0 0.0
      %208 = vmatpush1.msra.mxu0 0.0
      %209 = vmatprep.subr.mxu0 0.0
      %210 = vmatpush1.msra.mxu0 0.0
      %211 = vmatprep.subr.mxu0 0.0
      %212 = vmatpush1.msra.mxu0 0.0
      %213 = vmatprep.subr.mxu0 0.0
      %214 = vmatpush1.msra.mxu0 0.0
      %215 = vmatprep.subr.mxu0 0.0
      %216 = vmatpush1.msra.mxu0 0.0
      %217 = vmatprep.subr.mxu0 0.0
      %218 = vmatpush1.msra.mxu0 0.0
      %219 = vmatprep.subr.mxu0 0.0
      %220 = vmatpush1.msra.mxu0 0.0
      %221 = vmatprep.mubr.f32.mxu0 0.0
      %222 = vmatmul.mubr.f32.gmra.mrb[0].mxu0 %v148
      %v223 = vpop.f32.mrb[0].mxu0
      %v224 = vadd.f32 0.0, %v223
      %v225 = vpop.f32.mrb[0].mxu0
      %226 = vmatprep.mubr.f32.mxu0 0.0
      %227 = vmatmul.mubr.f32.gmra.mrb[0].mxu0 %v151
      %v228 = vpop.f32.mrb[0].mxu0
      %v229 = vadd.f32 0.0, %v228
      %v230 = vpop.f32.mrb[0].mxu0
      %231 = vdwg.mxu0
      %v232 = vld [vmem:[#allocation2] sm:$0xff]
      %v233 = vld [vmem:[#allocation2 + $0x8] sm:$0xff]
      %v234 = vld [vmem:[%s2] sm:$0x1]
      %v236 = vlaneseq
      %v237 = vshrl.u32 %v236, 7
      %v238 = vsub.s32 0, %v237
      %v239 = vrot.slane %v234, %v238
      %v241 = vadd.f32 %v232, %v239
      %v242 = vadd.f32 %v233, %v239
      %v243 = vmul.f32 %v224, 4.0
      %v244 = vmul.f32 %v229, 4.0
      %v245 = vadd.f32 %v241, %v243
      %v246 = vadd.f32 %v242, %v244
      %247 = vst [vmem:[#allocation6] sm:$0xff] %v245
      %248 = vst [vmem:[#allocation6 + $0x8] sm:$0xff] %v246
    $region33: #{tpu_custom_call.1} parent=1 // pred_fallthru
      _
    // Predicated region
    $region34: #{tpu_custom_call.1} parent=1 // pred_check
      _
    $region35: #{tpu_custom_call.1} parent=1 // pred_check_branch
      %250 = sbr.rel (0) target = $region37
    $region36: #{tpu_custom_call.1} parent=1 // pred_region
      %s252 = ssub.s32 256, 256
      %253 = vsyncadd [#allocation5], %s252
      %s254 = sshll.u32 [#allocation6], 4
      %s255 = int_to_ptr.vmem [resolvable:$true] %s254
      %260 = dma.vmem_to_hbm [thread:$0]  %s255, 256, %s5, [#allocation5], 128, 128, 8
    $region37: #{tpu_custom_call.1} parent=1 // pred_fallthru
      _
    // Predicated region
    $region38: #{tpu_custom_call.1} parent=1 // pred_check
      _
    $region39: #{tpu_custom_call.1} parent=1 // pred_check_branch
      %262 = sbr.rel (0) target = $region41
    $region40: #{tpu_custom_call.1} parent=1 // pred_region
      %263 = dma.done [#allocation5], 256
    $region41: #{tpu_custom_call.1} parent=1 // pred_fallthru
      _
    %264 = vsyncpa [#allocation4], 1
    %265 = vsyncpa [#allocation5], 1

</llo_original>
